<compile_context>
chip_gen: v6e
topology: v6e:2x2x1
jax: 0.10.0
libtpu: 0.0.40
codegen_flags: <defaults>
</compile_context>

<pallas_src>
import functools

import jax
import jax.numpy as jnp
from jax.experimental import pallas as pl
from jax.experimental.pallas import tpu as pltpu

INPUT_SIZE = 28 * 28   # 784
HIDDEN = 50
NUM_CLASSES = 10

# Padded (lane-dense) dims.
K_PAD = 896            # 7 * 128  (contraction dim of fc1)
H_PAD = 128            # hidden 50 -> 128
N_PAD = 128            # classes 10 -> 128
TB_MAX = 1024          # max batch-tile rows


def _round_up(x, m):
    return (x + m - 1) // m * m


def mlp_kernel(x_ref, w1_ref, b1_ref, w2_ref, b2_ref, o_ref):
    # x_ref : (TB, K_PAD)   bf16/f32
    # w1_ref: (K_PAD, H_PAD) bf16/f32    b1_ref: (1, H_PAD) f32
    # w2_ref: (H_PAD, N_PAD) bf16/f32    b2_ref: (1, N_PAD) f32
    # o_ref : (TB, N_PAD)   f32
    h = jnp.dot(x_ref[...], w1_ref[...], preferred_element_type=jnp.float32)
    h = jnp.maximum(h + b1_ref[...], 0.0)                      # bias + ReLU in f32
    y = jnp.dot(h.astype(w2_ref.dtype), w2_ref[...],
                preferred_element_type=jnp.float32)
    o_ref[...] = (y + b2_ref[...]).astype(o_ref.dtype)


@functools.partial(jax.jit, static_argnames=("compute_dtype",))
def nn_forward(x, w1, b1, w2, b2, compute_dtype=jnp.bfloat16):
    """Fused forward pass: relu(x @ w1 + b1) @ w2 + b2.

    x : (B, 784) f32.  w1: (784, 50), b1: (50,) or (1, 50),
    w2: (50, 10),  b2: (10,) or (1, 10)  (weights transposed vs. PyTorch).
    Returns (B, 10) f32 logits.
    """
    B, K = x.shape
    assert K == INPUT_SIZE

    # Batch tile: multiple of 128 rows (sublane/lane friendly), capped at TB_MAX.
    TB = min(TB_MAX, _round_up(max(B, 1), 128))
    B_pad = _round_up(B, TB)
    grid = (B_pad // TB,)

    # Zero-pad everything to lane-dense shapes (zeros are semantically inert:
    # padded K/H columns contribute 0, padded output columns are sliced away).
    x_p = jnp.zeros((B_pad, K_PAD), compute_dtype).at[:B, :K].set(
        x.astype(compute_dtype))
    w1_p = jnp.zeros((K_PAD, H_PAD), compute_dtype).at[:K, :HIDDEN].set(
        w1.astype(compute_dtype))
    b1_p = jnp.zeros((1, H_PAD), jnp.float32).at[:, :HIDDEN].set(
        b1.reshape(1, HIDDEN).astype(jnp.float32))
    w2_p = jnp.zeros((H_PAD, N_PAD), compute_dtype).at[:HIDDEN, :NUM_CLASSES].set(
        w2.astype(compute_dtype))
    b2_p = jnp.zeros((1, N_PAD), jnp.float32).at[:, :NUM_CLASSES].set(
        b2.reshape(1, NUM_CLASSES).astype(jnp.float32))

    itm = jnp.dtype(compute_dtype).itemsize
    flops = 2 * B_pad * K_PAD * H_PAD + 2 * B_pad * H_PAD * N_PAD
    bytes_accessed = (B_pad * K_PAD * itm            # x
                      + K_PAD * H_PAD * itm          # w1
                      + H_PAD * N_PAD * itm          # w2
                      + (H_PAD + N_PAD) * 4          # biases
                      + B_pad * N_PAD * 4)           # output

    out = pl.pallas_call(
        mlp_kernel,
        out_shape=jax.ShapeDtypeStruct((B_pad, N_PAD), jnp.float32),
        grid=grid,
        in_specs=[
            pl.BlockSpec((TB, K_PAD), lambda i: (i, 0)),      # x: streamed per tile
            pl.BlockSpec((K_PAD, H_PAD), lambda i: (0, 0)),   # w1: VMEM-resident
            pl.BlockSpec((1, H_PAD), lambda i: (0, 0)),       # b1: VMEM-resident
            pl.BlockSpec((H_PAD, N_PAD), lambda i: (0, 0)),   # w2: VMEM-resident
            pl.BlockSpec((1, N_PAD), lambda i: (0, 0)),       # b2: VMEM-resident
        ],
        out_specs=pl.BlockSpec((TB, N_PAD), lambda i: (i, 0)),
        compiler_params=pltpu.CompilerParams(
            dimension_semantics=("parallel",),        # shard batch tiles across TCs (v7x)
            vmem_limit_bytes=48 * 1024 * 1024,        # safe on v7x's 64 MiB physical VMEM
        ),
        cost_estimate=pl.CostEstimate(
            flops=flops, transcendentals=0, bytes_accessed=bytes_accessed),
    )(x_p, w1_p, b1_p, w2_p, b2_p)

    return out[:B, :NUM_CLASSES]


def init_params(key):
    """Init mimicking nn.Linear's uniform(-1/sqrt(fan_in), 1/sqrt(fan_in)).

    Weights are produced in (in_features, out_features) layout (transposed
    vs. PyTorch's (out, in)).
    """
    k1, k2, k3, k4 = jax.random.split(key, 4)
    bound1 = 1.0 / jnp.sqrt(jnp.float32(INPUT_SIZE))
    bound2 = 1.0 / jnp.sqrt(jnp.float32(HIDDEN))
    w1 = jax.random.uniform(k1, (INPUT_SIZE, HIDDEN), jnp.float32, -bound1, bound1)
    b1 = jax.random.uniform(k2, (1, HIDDEN), jnp.float32, -bound1, bound1)
    w2 = jax.random.uniform(k3, (HIDDEN, NUM_CLASSES), jnp.float32, -bound2, bound2)
    b2 = jax.random.uniform(k4, (1, NUM_CLASSES), jnp.float32, -bound2, bound2)
    return w1, b1, w2, b2


if __name__ == "__main__":
    key = jax.random.PRNGKey(0)
    k_x, k_p = jax.random.split(key)

    B = 8
    x = jax.random.normal(k_x, (B, INPUT_SIZE), jnp.float32)
    w1, b1, w2, b2 = init_params(k_p)

    # Pure-f32 reference (same semantics as the PyTorch forward).
    ref = jnp.maximum(x @ w1 + b1, 0.0) @ w2 + b2

    # Strict correctness check with f32 compute inside the kernel.
    out_f32 = jax.block_until_ready(
        nn_forward(x, w1, b1, w2, b2, compute_dtype=jnp.float32))
    assert out_f32.shape == (B, NUM_CLASSES)
    assert jnp.allclose(out_f32, ref, atol=1e-4, rtol=1e-4)

    # Default fast path: bf16 inputs, f32 accumulation (looser tolerance).
    out = jax.block_until_ready(nn_forward(x, w1, b1, w2, b2))
    assert out.shape == (B, NUM_CLASSES)
    assert jnp.allclose(out, ref, atol=5e-2, rtol=5e-2)

    print("KERNEL_OK")
</pallas_src>

<mosaic_0001>
module attributes {stable_mosaic.version = 11 : i64} {
  func.func @mlp_kernel(%arg0: i32, %arg1: memref<128x896xf32, #tpu.memory_space<vmem>>, %arg2: memref<896x128xf32, #tpu.memory_space<vmem>>, %arg3: memref<1x128xf32, #tpu.memory_space<vmem>>, %arg4: memref<128x128xf32, #tpu.memory_space<vmem>>, %arg5: memref<1x128xf32, #tpu.memory_space<vmem>>, %arg6: memref<128x128xf32, #tpu.memory_space<vmem>>) attributes {dimension_semantics = [#tpu.dimension_semantics<parallel>], iteration_bounds = array<i64: 1>, scalar_prefetch = 0 : i64, scratch_operands = 0 : i64, tpu.core_type = #tpu.core_type<tc>, window_params = [{transform_indices = @transform_0, window_bounds = array<i64: 128, 896>}, {pipeline_mode = #tpu.pipeline_mode<synchronous>, transform_indices = @transform_1, window_bounds = array<i64: 896, 128>}, {pipeline_mode = #tpu.pipeline_mode<synchronous>, transform_indices = @transform_2, window_bounds = array<i64: 1, 128>}, {pipeline_mode = #tpu.pipeline_mode<synchronous>, transform_indices = @transform_3, window_bounds = array<i64: 128, 128>}, {pipeline_mode = #tpu.pipeline_mode<synchronous>, transform_indices = @transform_4, window_bounds = array<i64: 1, 128>}, {transform_indices = @transform_5, window_bounds = array<i64: 128, 128>}]} {
    %c0 = arith.constant 0 : index
    %c0_0 = arith.constant 0 : index
    %0 = vector.load %arg1[%c0, %c0_0] : memref<128x896xf32, #tpu.memory_space<vmem>>, vector<128x896xf32>
    %c0_1 = arith.constant 0 : index
    %c0_2 = arith.constant 0 : index
    %1 = vector.load %arg2[%c0_1, %c0_2] : memref<896x128xf32, #tpu.memory_space<vmem>>, vector<896x128xf32>
    %cst = arith.constant dense<0.000000e+00> : vector<128x128xf32>
    %2 = tpu.matmul %0, %1, %cst {dimension_numbers = #tpu.dot_dimension_numbers<[1], [0], [0], [1], [0, 0, 1, 1], [], []>} : vector<128x896xf32>, vector<896x128xf32>, vector<128x128xf32> -> vector<128x128xf32>
    %c0_3 = arith.constant 0 : index
    %c0_4 = arith.constant 0 : index
    %3 = vector.load %arg3[%c0_3, %c0_4] : memref<1x128xf32, #tpu.memory_space<vmem>>, vector<1x128xf32>
    %4 = vector.broadcast %3 : vector<1x128xf32> to vector<128x128xf32>
    %5 = arith.addf %2, %4 : vector<128x128xf32>
    %cst_5 = arith.constant 0.000000e+00 : f32
    %6 = vector.broadcast %cst_5 : f32 to vector<128x128xf32>
    %7 = arith.maximumf %5, %6 : vector<128x128xf32>
    %c0_6 = arith.constant 0 : index
    %c0_7 = arith.constant 0 : index
    %8 = vector.load %arg4[%c0_6, %c0_7] : memref<128x128xf32, #tpu.memory_space<vmem>>, vector<128x128xf32>
    %cst_8 = arith.constant dense<0.000000e+00> : vector<128x128xf32>
    %9 = tpu.matmul %7, %8, %cst_8 {dimension_numbers = #tpu.dot_dimension_numbers<[1], [0], [0], [1], [0, 0, 1, 1], [], []>} : vector<128x128xf32>, vector<128x128xf32>, vector<128x128xf32> -> vector<128x128xf32>
    %c0_9 = arith.constant 0 : index
    %c0_10 = arith.constant 0 : index
    %10 = vector.load %arg5[%c0_9, %c0_10] : memref<1x128xf32, #tpu.memory_space<vmem>>, vector<1x128xf32>
    %11 = vector.broadcast %10 : vector<1x128xf32> to vector<128x128xf32>
    %12 = arith.addf %9, %11 : vector<128x128xf32>
    %c0_11 = arith.constant 0 : index
    %c0_12 = arith.constant 0 : index
    %13 = vector.load %arg6[%c0_11, %c0_12] : memref<128x128xf32, #tpu.memory_space<vmem>>, vector<128x128xf32>
    tpu.vector_store %arg6[%c0_11, %c0_12], %12 {strides = array<i32>} : memref<128x128xf32, #tpu.memory_space<vmem>>, vector<128x128xf32>,
    return
  }
  func.func @transform_0(%arg0: i32) -> (i32, i32) {
    %c0_i32 = arith.constant 0 : i32
    %c0_i32_0 = arith.constant 0 : i32
    return %arg0, %c0_i32 : i32, i32
  }
  func.func @transform_1(%arg0: i32) -> (i32, i32) {
    %c0_i32 = arith.constant 0 : i32
    %c0_i32_0 = arith.constant 0 : i32
    %c0_i32_1 = arith.constant 0 : i32
    return %c0_i32, %c0_i32_0 : i32, i32
  }
  func.func @transform_2(%arg0: i32) -> (i32, i32) {
    %c0_i32 = arith.constant 0 : i32
    %c0_i32_0 = arith.constant 0 : i32
    %c0_i32_1 = arith.constant 0 : i32
    return %c0_i32, %c0_i32_0 : i32, i32
  }
  func.func @transform_3(%arg0: i32) -> (i32, i32) {
    %c0_i32 = arith.constant 0 : i32
    %c0_i32_0 = arith.constant 0 : i32
    %c0_i32_1 = arith.constant 0 : i32
    return %c0_i32, %c0_i32_0 : i32, i32
  }
  func.func @transform_4(%arg0: i32) -> (i32, i32) {
    %c0_i32 = arith.constant 0 : i32
    %c0_i32_0 = arith.constant 0 : i32
    %c0_i32_1 = arith.constant 0 : i32
    return %c0_i32, %c0_i32_0 : i32, i32
  }
  func.func @transform_5(%arg0: i32) -> (i32, i32) {
    %c0_i32 = arith.constant 0 : i32
    %c0_i32_0 = arith.constant 0 : i32
    return %arg0, %c0_i32 : i32, i32
  }
}

</mosaic_0001>

<llo_original>
// kernel: nn_forward.1
$region0: #{nn_forward.1}
  #allocation0 [shape = 'u32[]', space=smem, size = 0x4, offset = 0x4, fixed_abs, tag = 'smem constant byte address 0x4 - core index']
  #allocation1 [shape = 'u32[144,128]{1,0:T(1,128)}', space=vmem, size = 0x12000, scoped, tag = 'internal scratch']
  %s0 = inlined_call_operand.vmem [shape: f32[128,896], index: 0, kind: input, shape index: {}]
  %s1 = inlined_call_operand.vmem [shape: f32[896,128], index: 1, kind: input, shape index: {}]
  %s2 = inlined_call_operand.vmem [shape: f32[1,128], index: 2, kind: input, shape index: {}]
  %s3 = inlined_call_operand.vmem [shape: f32[128,128], index: 3, kind: input, shape index: {}]
  %s4 = inlined_call_operand.vmem [shape: f32[1,128], index: 4, kind: input, shape index: {}]
  %s5 = inlined_call_operand.vmem [shape: f32[128,128], index: 5, kind: output, shape index: {}]
  %s6 = sld [smem:[#allocation0]]
  $region30: #{nn_forward.1} parent=0
    _
  %s8 = ssub.s32 1, %s6
  %s9 = scalar_select 0, %s8, %s6
  // Predicated region
  $region2: #{nn_forward.1} parent=0 // pred_check
    _
  $region3: #{nn_forward.1} parent=0 // pred_check_branch
    %11 = sbr.rel (0) target = $region5
  $region4: #{nn_forward.1} parent=0 // pred_region
    _
  $region5: #{nn_forward.1} parent=0 // pred_fallthru
    _
  // Predicated region
  $region6: #{nn_forward.1} parent=0 // pred_check
    _
  $region7: #{nn_forward.1} parent=0 // pred_check_branch
    %13 = sbr.rel (0) target = $region9
  $region8: #{nn_forward.1} parent=0 // pred_region
    _
  $region9: #{nn_forward.1} parent=0 // pred_fallthru
    _
  // Predicated region
  $region10: #{nn_forward.1} parent=0 // pred_check
    _
  $region11: #{nn_forward.1} parent=0 // pred_check_branch
    %15 = sbr.rel (0) target = $region13
  $region12: #{nn_forward.1} parent=0 // pred_region
    _
  $region13: #{nn_forward.1} parent=0 // pred_fallthru
    _
  // Predicated region
  $region14: #{nn_forward.1} parent=0 // pred_check
    _
  $region15: #{nn_forward.1} parent=0 // pred_check_branch
    %17 = sbr.rel (0) target = $region17
  $region16: #{nn_forward.1} parent=0 // pred_region
    _
  $region17: #{nn_forward.1} parent=0 // pred_fallthru
    _
  // Predicated region
  $region18: #{nn_forward.1} parent=0 // pred_check
    _
  $region19: #{nn_forward.1} parent=0 // pred_check_branch
    %19 = sbr.rel (0) target = $region21
  $region20: #{nn_forward.1} parent=0 // pred_region
    _
  $region21: #{nn_forward.1} parent=0 // pred_fallthru
    _
  %v20 = vld [vmem:[%s0] sm:$0xff]
  %v21 = vld [vmem:[%s0 + $0x8] sm:$0xff]
  %v22 = vld [vmem:[%s0 + $0x10] sm:$0xff]
  %v23 = vld [vmem:[%s0 + $0x18] sm:$0xff]
  %v24 = vld [vmem:[%s0 + $0x20] sm:$0xff]
  %v25 = vld [vmem:[%s0 + $0x28] sm:$0xff]
  %v26 = vld [vmem:[%s0 + $0x30] sm:$0xff]
  %v27 = vld [vmem:[%s0 + $0x38] sm:$0xff]
  %v28 = vld [vmem:[%s0 + $0x40] sm:$0xff]
  %v29 = vld [vmem:[%s0 + $0x48] sm:$0xff]
  %v30 = vld [vmem:[%s0 + $0x50] sm:$0xff]
  %v31 = vld [vmem:[%s0 + $0x58] sm:$0xff]
  %v32 = vld [vmem:[%s0 + $0x60] sm:$0xff]
  %v33 = vld [vmem:[%s0 + $0x68] sm:$0xff]
  %v34 = vld [vmem:[%s0 + $0x70] sm:$0xff]
  %v35 = vld [vmem:[%s0 + $0x78] sm:$0xff]
  %v36 = vld [vmem:[%s0 + $0x80] sm:$0xff]
  %v37 = vld [vmem:[%s0 + $0x88] sm:$0xff]
  %v38 = vld [vmem:[%s0 + $0x90] sm:$0xff]
  %v39 = vld [vmem:[%s0 + $0x98] sm:$0xff]
  %v40 = vld [vmem:[%s0 + $0xa0] sm:$0xff]
  %v41 = vld [vmem:[%s0 + $0xa8] sm:$0xff]
  %v42 = vld [vmem:[%s0 + $0xb0] sm:$0xff]
  %v43 = vld [vmem:[%s0 + $0xb8] sm:$0xff]
  %v44 = vld [vmem:[%s0 + $0xc0] sm:$0xff]
  %v45 = vld [vmem:[%s0 + $0xc8] sm:$0xff]
  %v46 = vld [vmem:[%s0 + $0xd0] sm:$0xff]
  %v47 = vld [vmem:[%s0 + $0xd8] sm:$0xff]
  %v48 = vld [vmem:[%s0 + $0xe0] sm:$0xff]
  %v49 = vld [vmem:[%s0 + $0xe8] sm:$0xff]
  %v50 = vld [vmem:[%s0 + $0xf0] sm:$0xff]
  %v51 = vld [vmem:[%s0 + $0xf8] sm:$0xff]
  %v52 = vld [vmem:[%s0 + $0x100] sm:$0xff]
  %v53 = vld [vmem:[%s0 + $0x108] sm:$0xff]
  %v54 = vld [vmem:[%s0 + $0x110] sm:$0xff]
  %v55 = vld [vmem:[%s0 + $0x118] sm:$0xff]
  %v56 = vld [vmem:[%s0 + $0x120] sm:$0xff]
  %v57 = vld [vmem:[%s0 + $0x128] sm:$0xff]
  %v58 = vld [vmem:[%s0 + $0x130] sm:$0xff]
  %v59 = vld [vmem:[%s0 + $0x138] sm:$0xff]
  %v60 = vld [vmem:[%s0 + $0x140] sm:$0xff]
  %v61 = vld [vmem:[%s0 + $0x148] sm:$0xff]
  %v62 = vld [vmem:[%s0 + $0x150] sm:$0xff]
  %v63 = vld [vmem:[%s0 + $0x158] sm:$0xff]
  %v64 = vld [vmem:[%s0 + $0x160] sm:$0xff]
  %v65 = vld [vmem:[%s0 + $0x168] sm:$0xff]
  %v66 = vld [vmem:[%s0 + $0x170] sm:$0xff]
  %v67 = vld [vmem:[%s0 + $0x178] sm:$0xff]
  %v68 = vld [vmem:[%s0 + $0x180] sm:$0xff]
  %v69 = vld [vmem:[%s0 + $0x188] sm:$0xff]
  %v70 = vld [vmem:[%s0 + $0x190] sm:$0xff]
  %v71 = vld [vmem:[%s0 + $0x198] sm:$0xff]
  %v72 = vld [vmem:[%s0 + $0x1a0] sm:$0xff]
  %v73 = vld [vmem:[%s0 + $0x1a8] sm:$0xff]
  %v74 = vld [vmem:[%s0 + $0x1b0] sm:$0xff]
  %v75 = vld [vmem:[%s0 + $0x1b8] sm:$0xff]
  %v76 = vld [vmem:[%s0 + $0x1c0] sm:$0xff]
  %v77 = vld [vmem:[%s0 + $0x1c8] sm:$0xff]
  %v78 = vld [vmem:[%s0 + $0x1d0] sm:$0xff]
  %v79 = vld [vmem:[%s0 + $0x1d8] sm:$0xff]
  %v80 = vld [vmem:[%s0 + $0x1e0] sm:$0xff]
  %v81 = vld [vmem:[%s0 + $0x1e8] sm:$0xff]
  %v82 = vld [vmem:[%s0 + $0x1f0] sm:$0xff]
  %v83 = vld [vmem:[%s0 + $0x1f8] sm:$0xff]
  %v84 = vld [vmem:[%s0 + $0x200] sm:$0xff]
  %v85 = vld [vmem:[%s0 + $0x208] sm:$0xff]
  %v86 = vld [vmem:[%s0 + $0x210] sm:$0xff]
  %v87 = vld [vmem:[%s0 + $0x218] sm:$0xff]
  %v88 = vld [vmem:[%s0 + $0x220] sm:$0xff]
  %v89 = vld [vmem:[%s0 + $0x228] sm:$0xff]
  %v90 = vld [vmem:[%s0 + $0x230] sm:$0xff]
  %v91 = vld [vmem:[%s0 + $0x238] sm:$0xff]
  %v92 = vld [vmem:[%s0 + $0x240] sm:$0xff]
  %v93 = vld [vmem:[%s0 + $0x248] sm:$0xff]
  %v94 = vld [vmem:[%s0 + $0x250] sm:$0xff]
  %v95 = vld [vmem:[%s0 + $0x258] sm:$0xff]
  %v96 = vld [vmem:[%s0 + $0x260] sm:$0xff]
  %v97 = vld [vmem:[%s0 + $0x268] sm:$0xff]
  %v98 = vld [vmem:[%s0 + $0x270] sm:$0xff]
  %v99 = vld [vmem:[%s0 + $0x278] sm:$0xff]
  %v100 = vld [vmem:[%s0 + $0x280] sm:$0xff]
  %v101 = vld [vmem:[%s0 + $0x288] sm:$0xff]
  %v102 = vld [vmem:[%s0 + $0x290] sm:$0xff]
  %v103 = vld [vmem:[%s0 + $0x298] sm:$0xff]
  %v104 = vld [vmem:[%s0 + $0x2a0] sm:$0xff]
  %v105 = vld [vmem:[%s0 + $0x2a8] sm:$0xff]
  %v106 = vld [vmem:[%s0 + $0x2b0] sm:$0xff]
  %v107 = vld [vmem:[%s0 + $0x2b8] sm:$0xff]
  %v108 = vld [vmem:[%s0 + $0x2c0] sm:$0xff]
  %v109 = vld [vmem:[%s0 + $0x2c8] sm:$0xff]
  %v110 = vld [vmem:[%s0 + $0x2d0] sm:$0xff]
  %v111 = vld [vmem:[%s0 + $0x2d8] sm:$0xff]
  %v112 = vld [vmem:[%s0 + $0x2e0] sm:$0xff]
  %v113 = vld [vmem:[%s0 + $0x2e8] sm:$0xff]
  %v114 = vld [vmem:[%s0 + $0x2f0] sm:$0xff]
  %v115 = vld [vmem:[%s0 + $0x2f8] sm:$0xff]
  %v116 = vld [vmem:[%s0 + $0x300] sm:$0xff]
  %v117 = vld [vmem:[%s0 + $0x308] sm:$0xff]
  %v118 = vld [vmem:[%s0 + $0x310] sm:$0xff]
  %v119 = vld [vmem:[%s0 + $0x318] sm:$0xff]
  %v120 = vld [vmem:[%s0 + $0x320] sm:$0xff]
  %v121 = vld [vmem:[%s0 + $0x328] sm:$0xff]
  %v122 = vld [vmem:[%s0 + $0x330] sm:$0xff]
  %v123 = vld [vmem:[%s0 + $0x338] sm:$0xff]
  %v124 = vld [vmem:[%s0 + $0x340] sm:$0xff]
  %v125 = vld [vmem:[%s0 + $0x348] sm:$0xff]
  %v126 = vld [vmem:[%s0 + $0x350] sm:$0xff]
  %v127 = vld [vmem:[%s0 + $0x358] sm:$0xff]
  %v128 = vld [vmem:[%s0 + $0x360] sm:$0xff]
  %v129 = vld [vmem:[%s0 + $0x368] sm:$0xff]
  %v130 = vld [vmem:[%s0 + $0x370] sm:$0xff]
  %v131 = vld [vmem:[%s0 + $0x378] sm:$0xff]
  %v132 = vld [vmem:[%s1] sm:$0xff]
  %v133 = vld [vmem:[%s1 + $0x8] sm:$0xff]
  %v134 = vld [vmem:[%s1 + $0x10] sm:$0xff]
  %v135 = vld [vmem:[%s1 + $0x18] sm:$0xff]
  %v136 = vld [vmem:[%s1 + $0x20] sm:$0xff]
  %v137 = vld [vmem:[%s1 + $0x28] sm:$0xff]
  %v138 = vld [vmem:[%s1 + $0x30] sm:$0xff]
  %v139 = vld [vmem:[%s1 + $0x38] sm:$0xff]
  %v140 = vld [vmem:[%s1 + $0x40] sm:$0xff]
  %v141 = vld [vmem:[%s1 + $0x48] sm:$0xff]
  %v142 = vld [vmem:[%s1 + $0x50] sm:$0xff]
  %v143 = vld [vmem:[%s1 + $0x58] sm:$0xff]
  %v144 = vld [vmem:[%s1 + $0x60] sm:$0xff]
  %v145 = vld [vmem:[%s1 + $0x68] sm:$0xff]
  %v146 = vld [vmem:[%s1 + $0x70] sm:$0xff]
  %v147 = vld [vmem:[%s1 + $0x78] sm:$0xff]
  %v148 = vld [vmem:[%s1 + $0x80] sm:$0xff]
  %v149 = vld [vmem:[%s1 + $0x88] sm:$0xff]
  %v150 = vld [vmem:[%s1 + $0x90] sm:$0xff]
  %v151 = vld [vmem:[%s1 + $0x98] sm:$0xff]
  %v152 = vld [vmem:[%s1 + $0xa0] sm:$0xff]
  %v153 = vld [vmem:[%s1 + $0xa8] sm:$0xff]
  %v154 = vld [vmem:[%s1 + $0xb0] sm:$0xff]
  %v155 = vld [vmem:[%s1 + $0xb8] sm:$0xff]
  %v156 = vld [vmem:[%s1 + $0xc0] sm:$0xff]
  %v157 = vld [vmem:[%s1 + $0xc8] sm:$0xff]
  %v158 = vld [vmem:[%s1 + $0xd0] sm:$0xff]
  %v159 = vld [vmem:[%s1 + $0xd8] sm:$0xff]
  %v160 = vld [vmem:[%s1 + $0xe0] sm:$0xff]
  %v161 = vld [vmem:[%s1 + $0xe8] sm:$0xff]
  %v162 = vld [vmem:[%s1 + $0xf0] sm:$0xff]
  %v163 = vld [vmem:[%s1 + $0xf8] sm:$0xff]
  %v164 = vld [vmem:[%s1 + $0x100] sm:$0xff]
  %v165 = vld [vmem:[%s1 + $0x108] sm:$0xff]
  %v166 = vld [vmem:[%s1 + $0x110] sm:$0xff]
  %v167 = vld [vmem:[%s1 + $0x118] sm:$0xff]
  %v168 = vld [vmem:[%s1 + $0x120] sm:$0xff]
  %v169 = vld [vmem:[%s1 + $0x128] sm:$0xff]
  %v170 = vld [vmem:[%s1 + $0x130] sm:$0xff]
  %v171 = vld [vmem:[%s1 + $0x138] sm:$0xff]
  %v172 = vld [vmem:[%s1 + $0x140] sm:$0xff]
  %v173 = vld [vmem:[%s1 + $0x148] sm:$0xff]
  %v174 = vld [vmem:[%s1 + $0x150] sm:$0xff]
  %v175 = vld [vmem:[%s1 + $0x158] sm:$0xff]
  %v176 = vld [vmem:[%s1 + $0x160] sm:$0xff]
  %v177 = vld [vmem:[%s1 + $0x168] sm:$0xff]
  %v178 = vld [vmem:[%s1 + $0x170] sm:$0xff]
  %v179 = vld [vmem:[%s1 + $0x178] sm:$0xff]
  %v180 = vld [vmem:[%s1 + $0x180] sm:$0xff]
  %v181 = vld [vmem:[%s1 + $0x188] sm:$0xff]
  %v182 = vld [vmem:[%s1 + $0x190] sm:$0xff]
  %v183 = vld [vmem:[%s1 + $0x198] sm:$0xff]
  %v184 = vld [vmem:[%s1 + $0x1a0] sm:$0xff]
  %v185 = vld [vmem:[%s1 + $0x1a8] sm:$0xff]
  %v186 = vld [vmem:[%s1 + $0x1b0] sm:$0xff]
  %v187 = vld [vmem:[%s1 + $0x1b8] sm:$0xff]
  %v188 = vld [vmem:[%s1 + $0x1c0] sm:$0xff]
  %v189 = vld [vmem:[%s1 + $0x1c8] sm:$0xff]
  %v190 = vld [vmem:[%s1 + $0x1d0] sm:$0xff]
  %v191 = vld [vmem:[%s1 + $0x1d8] sm:$0xff]
  %v192 = vld [vmem:[%s1 + $0x1e0] sm:$0xff]
  %v193 = vld [vmem:[%s1 + $0x1e8] sm:$0xff]
  %v194 = vld [vmem:[%s1 + $0x1f0] sm:$0xff]
  %v195 = vld [vmem:[%s1 + $0x1f8] sm:$0xff]
  %v196 = vld [vmem:[%s1 + $0x200] sm:$0xff]
  %v197 = vld [vmem:[%s1 + $0x208] sm:$0xff]
  %v198 = vld [vmem:[%s1 + $0x210] sm:$0xff]
  %v199 = vld [vmem:[%s1 + $0x218] sm:$0xff]
  %v200 = vld [vmem:[%s1 + $0x220] sm:$0xff]
  %v201 = vld [vmem:[%s1 + $0x228] sm:$0xff]
  %v202 = vld [vmem:[%s1 + $0x230] sm:$0xff]
  %v203 = vld [vmem:[%s1 + $0x238] sm:$0xff]
  %v204 = vld [vmem:[%s1 + $0x240] sm:$0xff]
  %v205 = vld [vmem:[%s1 + $0x248] sm:$0xff]
  %v206 = vld [vmem:[%s1 + $0x250] sm:$0xff]
  %v207 = vld [vmem:[%s1 + $0x258] sm:$0xff]
  %v208 = vld [vmem:[%s1 + $0x260] sm:$0xff]
  %v209 = vld [vmem:[%s1 + $0x268] sm:$0xff]
  %v210 = vld [vmem:[%s1 + $0x270] sm:$0xff]
  %v211 = vld [vmem:[%s1 + $0x278] sm:$0xff]
  %v212 = vld [vmem:[%s1 + $0x280] sm:$0xff]
  %v213 = vld [vmem:[%s1 + $0x288] sm:$0xff]
  %v214 = vld [vmem:[%s1 + $0x290] sm:$0xff]
  %v215 = vld [vmem:[%s1 + $0x298] sm:$0xff]
  %v216 = vld [vmem:[%s1 + $0x2a0] sm:$0xff]
  %v217 = vld [vmem:[%s1 + $0x2a8] sm:$0xff]
  %v218 = vld [vmem:[%s1 + $0x2b0] sm:$0xff]
  %v219 = vld [vmem:[%s1 + $0x2b8] sm:$0xff]
  %v220 = vld [vmem:[%s1 + $0x2c0] sm:$0xff]
  %v221 = vld [vmem:[%s1 + $0x2c8] sm:$0xff]
  %v222 = vld [vmem:[%s1 + $0x2d0] sm:$0xff]
  %v223 = vld [vmem:[%s1 + $0x2d8] sm:$0xff]
  %v224 = vld [vmem:[%s1 + $0x2e0] sm:$0xff]
  %v225 = vld [vmem:[%s1 + $0x2e8] sm:$0xff]
  %v226 = vld [vmem:[%s1 + $0x2f0] sm:$0xff]
  %v227 = vld [vmem:[%s1 + $0x2f8] sm:$0xff]
  %v228 = vld [vmem:[%s1 + $0x300] sm:$0xff]
  %v229 = vld [vmem:[%s1 + $0x308] sm:$0xff]
  %v230 = vld [vmem:[%s1 + $0x310] sm:$0xff]
  %v231 = vld [vmem:[%s1 + $0x318] sm:$0xff]
  %v232 = vld [vmem:[%s1 + $0x320] sm:$0xff]
  %v233 = vld [vmem:[%s1 + $0x328] sm:$0xff]
  %v234 = vld [vmem:[%s1 + $0x330] sm:$0xff]
  %v235 = vld [vmem:[%s1 + $0x338] sm:$0xff]
  %v236 = vld [vmem:[%s1 + $0x340] sm:$0xff]
  %v237 = vld [vmem:[%s1 + $0x348] sm:$0xff]
  %v238 = vld [vmem:[%s1 + $0x350] sm:$0xff]
  %v239 = vld [vmem:[%s1 + $0x358] sm:$0xff]
  %v240 = vld [vmem:[%s1 + $0x360] sm:$0xff]
  %v241 = vld [vmem:[%s1 + $0x368] sm:$0xff]
  %v242 = vld [vmem:[%s1 + $0x370] sm:$0xff]
  %v243 = vld [vmem:[%s1 + $0x378] sm:$0xff]
  %v244 = vld [vmem:[%s2] sm:$0x1]
  %v246 = vlaneseq
  %v247 = vshrl.u32 %v246, 7
  %v248 = vsub.s32 0, %v247
  %v249 = vrot.slane %v244, %v248
  %251 = vmatprep.subr.mxu0 0.0
  %252 = vmatpush1.msra.mxu0 %v147
  %253 = vmatprep.subr.mxu0 0.0
  %254 = vmatpush1.msra.mxu0 %v146
  %255 = vmatprep.subr.mxu0 0.0
  %256 = vmatpush1.msra.mxu0 %v145
  %257 = vmatprep.subr.mxu0 0.0
  %258 = vmatpush1.msra.mxu0 %v144
  %259 = vmatprep.subr.mxu0 0.0
  %260 = vmatpush1.msra.mxu0 %v143
  %261 = vmatprep.subr.mxu0 0.0
  %262 = vmatpush1.msra.mxu0 %v142
  %263 = vmatprep.subr.mxu0 0.0
  %264 = vmatpush1.msra.mxu0 %v141
  %265 = vmatprep.subr.mxu0 0.0
  %266 = vmatpush1.msra.mxu0 %v140
  %267 = vmatprep.subr.mxu0 0.0
  %268 = vmatpush1.msra.mxu0 %v139
  %269 = vmatprep.subr.mxu0 0.0
  %270 = vmatpush1.msra.mxu0 %v138
  %271 = vmatprep.subr.mxu0 0.0
  %272 = vmatpush1.msra.mxu0 %v137
  %273 = vmatprep.subr.mxu0 0.0
  %274 = vmatpush1.msra.mxu0 %v136
  %275 = vmatprep.subr.mxu0 0.0
  %276 = vmatpush1.msra.mxu0 %v135
  %277 = vmatprep.subr.mxu0 0.0
  %278 = vmatpush1.msra.mxu0 %v134
  %279 = vmatprep.subr.mxu0 0.0
  %280 = vmatpush1.msra.mxu0 %v133
  %281 = vmatprep.subr.mxu0 0.0
  %282 = vmatpush1.msra.mxu0 %v132
  %283 = vmatprep.subr.mxu0 0.0
  %284 = vmatpush2.msra.mxu0 %v163
  %285 = vmatprep.subr.mxu0 0.0
  %286 = vmatpush2.msra.mxu0 %v162
  %287 = vmatprep.subr.mxu0 0.0
  %288 = vmatpush2.msra.mxu0 %v161
  %289 = vmatprep.subr.mxu0 0.0
  %290 = vmatpush2.msra.mxu0 %v160
  %291 = vmatprep.subr.mxu0 0.0
  %292 = vmatpush2.msra.mxu0 %v159
  %293 = vmatprep.subr.mxu0 0.0
  %294 = vmatpush2.msra.mxu0 %v158
  %295 = vmatprep.subr.mxu0 0.0
  %296 = vmatpush2.msra.mxu0 %v157
  %297 = vmatprep.subr.mxu0 0.0
  %298 = vmatpush2.msra.mxu0 %v156
  %299 = vmatprep.subr.mxu0 0.0
  %300 = vmatpush2.msra.mxu0 %v155
  %301 = vmatprep.subr.mxu0 0.0
  %302 = vmatpush2.msra.mxu0 %v154
  %303 = vmatprep.subr.mxu0 0.0
  %304 = vmatpush2.msra.mxu0 %v153
  %305 = vmatprep.subr.mxu0 0.0
  %306 = vmatpush2.msra.mxu0 %v152
  %307 = vmatprep.subr.mxu0 0.0
  %308 = vmatpush2.msra.mxu0 %v151
  %309 = vmatprep.subr.mxu0 0.0
  %310 = vmatpush2.msra.mxu0 %v150
  %311 = vmatprep.subr.mxu0 0.0
  %312 = vmatpush2.msra.mxu0 %v149
  %313 = vmatprep.subr.mxu0 0.0
  %314 = vmatpush2.msra.mxu0 %v148
  %315 = vmatprep.mubr.f32.mxu0 %v21
  %316 = vmatmul.mubr.f32.gmra.mxu0 %v20
  %v317 = vpop.f32.mrf.mxu0
  %v318 = vadd.f32 %v249, %v317
  %v319 = vpop.f32.mrf.mxu0
  %320 = vmatprep.mubr.f32.mxu0 %v28
  %321 = vmatmul.mubr.f32.gmra.mxu0 %v27
  %v322 = vpop.f32.mrf.mxu0
  %v323 = vadd.f32 %v249, %v322
  %v324 = vpop.f32.mrf.mxu0
  %325 = vmatprep.mubr.f32.mxu0 %v35
  %326 = vmatmul.mubr.f32.gmra.mxu0 %v34
  %v327 = vpop.f32.mrf.mxu0
  %v328 = vadd.f32 %v249, %v327
  %v329 = vpop.f32.mrf.mxu0
  %330 = vmatprep.mubr.f32.mxu0 %v42
  %331 = vmatmul.mubr.f32.gmra.mxu0 %v41
  %v332 = vpop.f32.mrf.mxu0
  %v333 = vadd.f32 %v249, %v332
  %v334 = vpop.f32.mrf.mxu0
  %335 = vmatprep.mubr.f32.mxu0 %v49
  %336 = vmatmul.mubr.f32.gmra.mxu0 %v48
  %v337 = vpop.f32.mrf.mxu0
  %v338 = vadd.f32 %v249, %v337
  %v339 = vpop.f32.mrf.mxu0
  %340 = vmatprep.mubr.f32.mxu0 %v56
  %341 = vmatmul.mubr.f32.gmra.mxu0 %v55
  %v342 = vpop.f32.mrf.mxu0
  %v343 = vadd.f32 %v249, %v342
  %v344 = vpop.f32.mrf.mxu0
  %345 = vmatprep.mubr.f32.mxu0 %v63
  %346 = vmatmul.mubr.f32.gmra.mxu0 %v62
  %v347 = vpop.f32.mrf.mxu0
  %v348 = vadd.f32 %v249, %v347
  %v349 = vpop.f32.mrf.mxu0
  %350 = vmatprep.mubr.f32.mxu0 %v70
  %351 = vmatmul.mubr.f32.gmra.mxu0 %v69
  %v352 = vpop.f32.mrf.mxu0
  %v353 = vadd.f32 %v249, %v352
  %v354 = vpop.f32.mrf.mxu0
  %355 = vmatprep.mubr.f32.mxu0 %v77
  %356 = vmatmul.mubr.f32.gmra.mxu0 %v76
  %v357 = vpop.f32.mrf.mxu0
  %v358 = vadd.f32 %v249, %v357
  %v359 = vpop.f32.mrf.mxu0
  %360 = vmatprep.mubr.f32.mxu0 %v84
  %361 = vmatmul.mubr.f32.gmra.mxu0 %v83
  %v362 = vpop.f32.mrf.mxu0
  %v363 = vadd.f32 %v249, %v362
  %v364 = vpop.f32.mrf.mxu0
  %365 = vmatprep.mubr.f32.mxu0 %v91
  %366 = vmatmul.mubr.f32.gmra.mxu0 %v90
  %v367 = vpop.f32.mrf.mxu0
  %v368 = vadd.f32 %v249, %v367
  %v369 = vpop.f32.mrf.mxu0
  %370 = vmatprep.mubr.f32.mxu0 %v98
  %371 = vmatmul.mubr.f32.gmra.mxu0 %v97
  %v372 = vpop.f32.mrf.mxu0
  %v373 = vadd.f32 %v249, %v372
  %v374 = vpop.f32.mrf.mxu0
  %375 = vmatprep.mubr.f32.mxu0 %v105
  %376 = vmatmul.mubr.f32.gmra.mxu0 %v104
  %v377 = vpop.f32.mrf.mxu0
  %v378 = vadd.f32 %v249, %v377
  %v379 = vpop.f32.mrf.mxu0
  %380 = vmatprep.mubr.f32.mxu0 %v112
  %381 = vmatmul.mubr.f32.gmra.mxu0 %v111
  %v382 = vpop.f32.mrf.mxu0
  %v383 = vadd.f32 %v249, %v382
  %v384 = vpop.f32.mrf.mxu0
  %385 = vmatprep.mubr.f32.mxu0 %v119
  %386 = vmatmul.mubr.f32.gmra.mxu0 %v118
  %v387 = vpop.f32.mrf.mxu0
  %v388 = vadd.f32 %v249, %v387
  %v389 = vpop.f32.mrf.mxu0
  %390 = vmatprep.mubr.f32.mxu0 %v126
  %391 = vmatmul.mubr.f32.gmra.mxu0 %v125
  %v392 = vpop.f32.mrf.mxu0
  %v393 = vadd.f32 %v249, %v392
  %v394 = vpop.f32.mrf.mxu0
  %395 = vdwg.mxu0
  %396 = vmatprep.subr.mxu0 0.0
  %397 = vmatpush1.msra.mxu0 %v179
  %398 = vmatprep.subr.mxu0 0.0
  %399 = vmatpush1.msra.mxu0 %v178
  %400 = vmatprep.subr.mxu0 0.0
  %401 = vmatpush1.msra.mxu0 %v177
  %402 = vmatprep.subr.mxu0 0.0
  %403 = vmatpush1.msra.mxu0 %v176
  %404 = vmatprep.subr.mxu0 0.0
  %405 = vmatpush1.msra.mxu0 %v175
  %406 = vmatprep.subr.mxu0 0.0
  %407 = vmatpush1.msra.mxu0 %v174
  %408 = vmatprep.subr.mxu0 0.0
  %409 = vmatpush1.msra.mxu0 %v173
  %410 = vmatprep.subr.mxu0 0.0
  %411 = vmatpush1.msra.mxu0 %v172
  %412 = vmatprep.subr.mxu0 0.0
  %413 = vmatpush1.msra.mxu0 %v171
  %414 = vmatprep.subr.mxu0 0.0
  %415 = vmatpush1.msra.mxu0 %v170
  %416 = vmatprep.subr.mxu0 0.0
  %417 = vmatpush1.msra.mxu0 %v169
  %418 = vmatprep.subr.mxu0 0.0
  %419 = vmatpush1.msra.mxu0 %v168
  %420 = vmatprep.subr.mxu0 0.0
  %421 = vmatpush1.msra.mxu0 %v167
  %422 = vmatprep.subr.mxu0 0.0
  %423 = vmatpush1.msra.mxu0 %v166
  %424 = vmatprep.subr.mxu0 0.0
  %425 = vmatpush1.msra.mxu0 %v165
  %426 = vmatprep.subr.mxu0 0.0
  %427 = vmatpush1.msra.mxu0 %v164
  %428 = vmatprep.subr.mxu0 0.0
  %429 = vmatpush2.msra.mxu0 %v195
  %430 = vmatprep.subr.mxu0 0.0
  %431 = vmatpush2.msra.mxu0 %v194
  %432 = vmatprep.subr.mxu0 0.0
  %433 = vmatpush2.msra.mxu0 %v193
  %434 = vmatprep.subr.mxu0 0.0
  %435 = vmatpush2.msra.mxu0 %v192
  %436 = vmatprep.subr.mxu0 0.0
  %437 = vmatpush2.msra.mxu0 %v191
  %438 = vmatprep.subr.mxu0 0.0
  %439 = vmatpush2.msra.mxu0 %v190
  %440 = vmatprep.subr.mxu0 0.0
  %441 = vmatpush2.msra.mxu0 %v189
  %442 = vmatprep.subr.mxu0 0.0
  %443 = vmatpush2.msra.mxu0 %v188
  %444 = vmatprep.subr.mxu0 0.0
  %445 = vmatpush2.msra.mxu0 %v187
  %446 = vmatprep.subr.mxu0 0.0
  %447 = vmatpush2.msra.mxu0 %v186
  %448 = vmatprep.subr.mxu0 0.0
  %449 = vmatpush2.msra.mxu0 %v185
  %450 = vmatprep.subr.mxu0 0.0
  %451 = vmatpush2.msra.mxu0 %v184
  %452 = vmatprep.subr.mxu0 0.0
  %453 = vmatpush2.msra.mxu0 %v183
  %454 = vmatprep.subr.mxu0 0.0
  %455 = vmatpush2.msra.mxu0 %v182
  %456 = vmatprep.subr.mxu0 0.0
  %457 = vmatpush2.msra.mxu0 %v181
  %458 = vmatprep.subr.mxu0 0.0
  %459 = vmatpush2.msra.mxu0 %v180
  %460 = vmatprep.mubr.f32.mxu0 %v23
  %461 = vmatmul.mubr.f32.gmra.mxu0 %v22
  %v462 = vpop.f32.mrf.mxu0
  %v463 = vadd.f32 %v318, %v462
  %v464 = vpop.f32.mrf.mxu0
  %465 = vmatprep.mubr.f32.mxu0 %v30
  %466 = vmatmul.mubr.f32.gmra.mxu0 %v29
  %v467 = vpop.f32.mrf.mxu0
  %v468 = vadd.f32 %v323, %v467
  %v469 = vpop.f32.mrf.mxu0
  %470 = vmatprep.mubr.f32.mxu0 %v37
  %471 = vmatmul.mubr.f32.gmra.mxu0 %v36
  %v472 = vpop.f32.mrf.mxu0
  %v473 = vadd.f32 %v328, %v472
  %v474 = vpop.f32.mrf.mxu0
  %475 = vmatprep.mubr.f32.mxu0 %v44
  %476 = vmatmul.mubr.f32.gmra.mxu0 %v43
  %v477 = vpop.f32.mrf.mxu0
  %v478 = vadd.f32 %v333, %v477
  %v479 = vpop.f32.mrf.mxu0
  %480 = vmatprep.mubr.f32.mxu0 %v51
  %481 = vmatmul.mubr.f32.gmra.mxu0 %v50
  %v482 = vpop.f32.mrf.mxu0
  %v483 = vadd.f32 %v338, %v482
  %v484 = vpop.f32.mrf.mxu0
  %485 = vmatprep.mubr.f32.mxu0 %v58
  %486 = vmatmul.mubr.f32.gmra.mxu0 %v57
  %v487 = vpop.f32.mrf.mxu0
  %v488 = vadd.f32 %v343, %v487
  %v489 = vpop.f32.mrf.mxu0
  %490 = vmatprep.mubr.f32.mxu0 %v65
  %491 = vmatmul.mubr.f32.gmra.mxu0 %v64
  %v492 = vpop.f32.mrf.mxu0
  %v493 = vadd.f32 %v348, %v492
  %v494 = vpop.f32.mrf.mxu0
  %495 = vmatprep.mubr.f32.mxu0 %v72
  %496 = vmatmul.mubr.f32.gmra.mxu0 %v71
  %v497 = vpop.f32.mrf.mxu0
  %v498 = vadd.f32 %v353, %v497
  %v499 = vpop.f32.mrf.mxu0
  %500 = vmatprep.mubr.f32.mxu0 %v79
  %501 = vmatmul.mubr.f32.gmra.mxu0 %v78
  %v502 = vpop.f32.mrf.mxu0
  %v503 = vadd.f32 %v358, %v502
  %v504 = vpop.f32.mrf.mxu0
  %505 = vmatprep.mubr.f32.mxu0 %v86
  %506 = vmatmul.mubr.f32.gmra.mxu0 %v85
  %v507 = vpop.f32.mrf.mxu0
  %v508 = vadd.f32 %v363, %v507
  %v509 = vpop.f32.mrf.mxu0
  %510 = vmatprep.mubr.f32.mxu0 %v93
  %511 = vmatmul.mubr.f32.gmra.mxu0 %v92
  %v512 = vpop.f32.mrf.mxu0
  %v513 = vadd.f32 %v368, %v512
  %v514 = vpop.f32.mrf.mxu0
  %515 = vmatprep.mubr.f32.mxu0 %v100
  %516 = vmatmul.mubr.f32.gmra.mxu0 %v99
  %v517 = vpop.f32.mrf.mxu0
  %v518 = vadd.f32 %v373, %v517
  %v519 = vpop.f32.mrf.mxu0
  %520 = vmatprep.mubr.f32.mxu0 %v107
  %521 = vmatmul.mubr.f32.gmra.mxu0 %v106
  %v522 = vpop.f32.mrf.mxu0
  %v523 = vadd.f32 %v378, %v522
  %v524 = vpop.f32.mrf.mxu0
  %525 = vmatprep.mubr.f32.mxu0 %v114
  %526 = vmatmul.mubr.f32.gmra.mxu0 %v113
  %v527 = vpop.f32.mrf.mxu0
  %v528 = vadd.f32 %v383, %v527
  %v529 = vpop.f32.mrf.mxu0
  %530 = vmatprep.mubr.f32.mxu0 %v121
  %531 = vmatmul.mubr.f32.gmra.mxu0 %v120
  %v532 = vpop.f32.mrf.mxu0
  %v533 = vadd.f32 %v388, %v532
  %v534 = vpop.f32.mrf.mxu0
  %535 = vmatprep.mubr.f32.mxu0 %v128
  %536 = vmatmul.mubr.f32.gmra.mxu0 %v127
  %v537 = vpop.f32.mrf.mxu0
  %v538 = vadd.f32 %v393, %v537
  %v539 = vpop.f32.mrf.mxu0
  %540 = vdwg.mxu0
  %541 = vmatprep.subr.mxu0 0.0
  %542 = vmatpush1.msra.mxu0 %v211
  %543 = vmatprep.subr.mxu0 0.0
  %544 = vmatpush1.msra.mxu0 %v210
  %545 = vmatprep.subr.mxu0 0.0
  %546 = vmatpush1.msra.mxu0 %v209
  %547 = vmatprep.subr.mxu0 0.0
  %548 = vmatpush1.msra.mxu0 %v208
  %549 = vmatprep.subr.mxu0 0.0
  %550 = vmatpush1.msra.mxu0 %v207
  %551 = vmatprep.subr.mxu0 0.0
  %552 = vmatpush1.msra.mxu0 %v206
  %553 = vmatprep.subr.mxu0 0.0
  %554 = vmatpush1.msra.mxu0 %v205
  %555 = vmatprep.subr.mxu0 0.0
  %556 = vmatpush1.msra.mxu0 %v204
  %557 = vmatprep.subr.mxu0 0.0
  %558 = vmatpush1.msra.mxu0 %v203
  %559 = vmatprep.subr.mxu0 0.0
  %560 = vmatpush1.msra.mxu0 %v202
  %561 = vmatprep.subr.mxu0 0.0
  %562 = vmatpush1.msra.mxu0 %v201
  %563 = vmatprep.subr.mxu0 0.0
  %564 = vmatpush1.msra.mxu0 %v200
  %565 = vmatprep.subr.mxu0 0.0
  %566 = vmatpush1.msra.mxu0 %v199
  %567 = vmatprep.subr.mxu0 0.0
  %568 = vmatpush1.msra.mxu0 %v198
  %569 = vmatprep.subr.mxu0 0.0
  %570 = vmatpush1.msra.mxu0 %v197
  %571 = vmatprep.subr.mxu0 0.0
  %572 = vmatpush1.msra.mxu0 %v196
  %573 = vmatprep.subr.mxu0 0.0
  %574 = vmatpush2.msra.mxu0 %v227
  %575 = vmatprep.subr.mxu0 0.0
  %576 = vmatpush2.msra.mxu0 %v226
  %577 = vmatprep.subr.mxu0 0.0
  %578 = vmatpush2.msra.mxu0 %v225
  %579 = vmatprep.subr.mxu0 0.0
  %580 = vmatpush2.msra.mxu0 %v224
  %581 = vmatprep.subr.mxu0 0.0
  %582 = vmatpush2.msra.mxu0 %v223
  %583 = vmatprep.subr.mxu0 0.0
  %584 = vmatpush2.msra.mxu0 %v222
  %585 = vmatprep.subr.mxu0 0.0
  %586 = vmatpush2.msra.mxu0 %v221
  %587 = vmatprep.subr.mxu0 0.0
  %588 = vmatpush2.msra.mxu0 %v220
  %589 = vmatprep.subr.mxu0 0.0
  %590 = vmatpush2.msra.mxu0 %v219
  %591 = vmatprep.subr.mxu0 0.0
  %592 = vmatpush2.msra.mxu0 %v218
  %593 = vmatprep.subr.mxu0 0.0
  %594 = vmatpush2.msra.mxu0 %v217
  %595 = vmatprep.subr.mxu0 0.0
  %596 = vmatpush2.msra.mxu0 %v216
  %597 = vmatprep.subr.mxu0 0.0
  %598 = vmatpush2.msra.mxu0 %v215
  %599 = vmatprep.subr.mxu0 0.0
  %600 = vmatpush2.msra.mxu0 %v214
  %601 = vmatprep.subr.mxu0 0.0
  %602 = vmatpush2.msra.mxu0 %v213
  %603 = vmatprep.subr.mxu0 0.0
  %604 = vmatpush2.msra.mxu0 %v212
  %605 = vmatprep.mubr.f32.mxu0 %v25
  %606 = vmatmul.mubr.f32.gmra.mxu0 %v24
  %v607 = vpop.f32.mrf.mxu0
  %v608 = vadd.f32 %v463, %v607
  %v609 = vpop.f32.mrf.mxu0
  %610 = vmatprep.mubr.f32.mxu0 %v32
  %611 = vmatmul.mubr.f32.gmra.mxu0 %v31
  %v612 = vpop.f32.mrf.mxu0
  %v613 = vadd.f32 %v468, %v612
  %v614 = vpop.f32.mrf.mxu0
  %615 = vmatprep.mubr.f32.mxu0 %v39
  %616 = vmatmul.mubr.f32.gmra.mxu0 %v38
  %v617 = vpop.f32.mrf.mxu0
  %v618 = vadd.f32 %v473, %v617
  %v619 = vpop.f32.mrf.mxu0
  %620 = vmatprep.mubr.f32.mxu0 %v46
  %621 = vmatmul.mubr.f32.gmra.mxu0 %v45
  %v622 = vpop.f32.mrf.mxu0
  %v623 = vadd.f32 %v478, %v622
  %v624 = vpop.f32.mrf.mxu0
  %625 = vmatprep.mubr.f32.mxu0 %v53
  %626 = vmatmul.mubr.f32.gmra.mxu0 %v52
  %v627 = vpop.f32.mrf.mxu0
  %v628 = vadd.f32 %v483, %v627
  %v629 = vpop.f32.mrf.mxu0
  %630 = vmatprep.mubr.f32.mxu0 %v60
  %631 = vmatmul.mubr.f32.gmra.mxu0 %v59
  %v632 = vpop.f32.mrf.mxu0
  %v633 = vadd.f32 %v488, %v632
  %v634 = vpop.f32.mrf.mxu0
  %635 = vmatprep.mubr.f32.mxu0 %v67
  %636 = vmatmul.mubr.f32.gmra.mxu0 %v66
  %v637 = vpop.f32.mrf.mxu0
  %v638 = vadd.f32 %v493, %v637
  %v639 = vpop.f32.mrf.mxu0
  %640 = vmatprep.mubr.f32.mxu0 %v74
  %641 = vmatmul.mubr.f32.gmra.mxu0 %v73
  %v642 = vpop.f32.mrf.mxu0
  %v643 = vadd.f32 %v498, %v642
  %v644 = vpop.f32.mrf.mxu0
  %645 = vmatprep.mubr.f32.mxu0 %v81
  %646 = vmatmul.mubr.f32.gmra.mxu0 %v80
  %v647 = vpop.f32.mrf.mxu0
  %v648 = vadd.f32 %v503, %v647
  %v649 = vpop.f32.mrf.mxu0
  %650 = vmatprep.mubr.f32.mxu0 %v88
  %651 = vmatmul.mubr.f32.gmra.mxu0 %v87
  %v652 = vpop.f32.mrf.mxu0
  %v653 = vadd.f32 %v508, %v652
  %v654 = vpop.f32.mrf.mxu0
  %655 = vmatprep.mubr.f32.mxu0 %v95
  %656 = vmatmul.mubr.f32.gmra.mxu0 %v94
  %v657 = vpop.f32.mrf.mxu0
  %v658 = vadd.f32 %v513, %v657
  %v659 = vpop.f32.mrf.mxu0
  %660 = vmatprep.mubr.f32.mxu0 %v102
  %661 = vmatmul.mubr.f32.gmra.mxu0 %v101
  %v662 = vpop.f32.mrf.mxu0
  %v663 = vadd.f32 %v518, %v662
  %v664 = vpop.f32.mrf.mxu0
  %665 = vmatprep.mubr.f32.mxu0 %v109
  %666 = vmatmul.mubr.f32.gmra.mxu0 %v108
  %v667 = vpop.f32.mrf.mxu0
  %v668 = vadd.f32 %v523, %v667
  %v669 = vpop.f32.mrf.mxu0
  %670 = vmatprep.mubr.f32.mxu0 %v116
  %671 = vmatmul.mubr.f32.gmra.mxu0 %v115
  %v672 = vpop.f32.mrf.mxu0
  %v673 = vadd.f32 %v528, %v672
  %v674 = vpop.f32.mrf.mxu0
  %675 = vmatprep.mubr.f32.mxu0 %v123
  %676 = vmatmul.mubr.f32.gmra.mxu0 %v122
  %v677 = vpop.f32.mrf.mxu0
  %v678 = vadd.f32 %v533, %v677
  %v679 = vpop.f32.mrf.mxu0
  %680 = vmatprep.mubr.f32.mxu0 %v130
  %681 = vmatmul.mubr.f32.gmra.mxu0 %v129
  %v682 = vpop.f32.mrf.mxu0
  %v683 = vadd.f32 %v538, %v682
  %v684 = vpop.f32.mrf.mxu0
  %685 = vdwg.mxu0
  %686 = vmatprep.subr.mxu0 0.0
  %687 = vmatpush1.msra.mxu0 %v243
  %688 = vmatprep.subr.mxu0 0.0
  %689 = vmatpush1.msra.mxu0 %v242
  %690 = vmatprep.subr.mxu0 0.0
  %691 = vmatpush1.msra.mxu0 %v241
  %692 = vmatprep.subr.mxu0 0.0
  %693 = vmatpush1.msra.mxu0 %v240
  %694 = vmatprep.subr.mxu0 0.0
  %695 = vmatpush1.msra.mxu0 %v239
  %696 = vmatprep.subr.mxu0 0.0
  %697 = vmatpush1.msra.mxu0 %v238
  %698 = vmatprep.subr.mxu0 0.0
  %699 = vmatpush1.msra.mxu0 %v237
  %700 = vmatprep.subr.mxu0 0.0
  %701 = vmatpush1.msra.mxu0 %v236
  %702 = vmatprep.subr.mxu0 0.0
  %703 = vmatpush1.msra.mxu0 %v235
  %704 = vmatprep.subr.mxu0 0.0
  %705 = vmatpush1.msra.mxu0 %v234
  %706 = vmatprep.subr.mxu0 0.0
  %707 = vmatpush1.msra.mxu0 %v233
  %708 = vmatprep.subr.mxu0 0.0
  %709 = vmatpush1.msra.mxu0 %v232
  %710 = vmatprep.subr.mxu0 0.0
  %711 = vmatpush1.msra.mxu0 %v231
  %712 = vmatprep.subr.mxu0 0.0
  %713 = vmatpush1.msra.mxu0 %v230
  %714 = vmatprep.subr.mxu0 0.0
  %715 = vmatpush1.msra.mxu0 %v229
  %716 = vmatprep.subr.mxu0 0.0
  %717 = vmatpush1.msra.mxu0 %v228
  %718 = vmatprep.subr.mxu0 0.0
  %719 = vmatpush2.msra.mxu0 0.0
  %720 = vmatprep.subr.mxu0 0.0
  %721 = vmatpush2.msra.mxu0 0.0
  %722 = vmatprep.subr.mxu0 0.0
  %723 = vmatpush2.msra.mxu0 0.0
  %724 = vmatprep.subr.mxu0 0.0
  %725 = vmatpush2.msra.mxu0 0.0
  %726 = vmatprep.subr.mxu0 0.0
  %727 = vmatpush2.msra.mxu0 0.0
  %728 = vmatprep.subr.mxu0 0.0
  %729 = vmatpush2.msra.mxu0 0.0
  %730 = vmatprep.subr.mxu0 0.0
  %731 = vmatpush2.msra.mxu0 0.0
  %732 = vmatprep.subr.mxu0 0.0
  %733 = vmatpush2.msra.mxu0 0.0
  %734 = vmatprep.subr.mxu0 0.0
  %735 = vmatpush2.msra.mxu0 0.0
  %736 = vmatprep.subr.mxu0 0.0
  %737 = vmatpush2.msra.mxu0 0.0
  %738 = vmatprep.subr.mxu0 0.0
  %739 = vmatpush2.msra.mxu0 0.0
  %740 = vmatprep.subr.mxu0 0.0
  %741 = vmatpush2.msra.mxu0 0.0
  %742 = vmatprep.subr.mxu0 0.0
  %743 = vmatpush2.msra.mxu0 0.0
  %744 = vmatprep.subr.mxu0 0.0
  %745 = vmatpush2.msra.mxu0 0.0
  %746 = vmatprep.subr.mxu0 0.0
  %747 = vmatpush2.msra.mxu0 0.0
  %748 = vmatprep.subr.mxu0 0.0
  %749 = vmatpush2.msra.mxu0 0.0
  %750 = vmatprep.mubr.f32.mxu0 0.0
  %751 = vmatmul.mubr.f32.gmra.mxu0 %v26
  %v752 = vpop.f32.mrf.mxu0
  %v753 = vadd.f32 %v608, %v752
  %v754 = vpop.f32.mrf.mxu0
  %755 = vmatprep.mubr.f32.mxu0 0.0
  %756 = vmatmul.mubr.f32.gmra.mxu0 %v33
  %v757 = vpop.f32.mrf.mxu0
  %v758 = vadd.f32 %v613, %v757
  %v759 = vpop.f32.mrf.mxu0
  %760 = vmatprep.mubr.f32.mxu0 0.0
  %761 = vmatmul.mubr.f32.gmra.mxu0 %v40
  %v762 = vpop.f32.mrf.mxu0
  %v763 = vadd.f32 %v618, %v762
  %v764 = vpop.f32.mrf.mxu0
  %765 = vmatprep.mubr.f32.mxu0 0.0
  %766 = vmatmul.mubr.f32.gmra.mxu0 %v47
  %v767 = vpop.f32.mrf.mxu0
  %v768 = vadd.f32 %v623, %v767
  %v769 = vpop.f32.mrf.mxu0
  %770 = vmatprep.mubr.f32.mxu0 0.0
  %771 = vmatmul.mubr.f32.gmra.mxu0 %v54
  %v772 = vpop.f32.mrf.mxu0
  %v773 = vadd.f32 %v628, %v772
  %v774 = vpop.f32.mrf.mxu0
  %775 = vmatprep.mubr.f32.mxu0 0.0
  %776 = vmatmul.mubr.f32.gmra.mxu0 %v61
  %v777 = vpop.f32.mrf.mxu0
  %v778 = vadd.f32 %v633, %v777
  %v779 = vpop.f32.mrf.mxu0
  %780 = vmatprep.mubr.f32.mxu0 0.0
  %781 = vmatmul.mubr.f32.gmra.mxu0 %v68
  %v782 = vpop.f32.mrf.mxu0
  %v783 = vadd.f32 %v638, %v782
  %v784 = vpop.f32.mrf.mxu0
  %785 = vmatprep.mubr.f32.mxu0 0.0
  %786 = vmatmul.mubr.f32.gmra.mxu0 %v75
  %v787 = vpop.f32.mrf.mxu0
  %v788 = vadd.f32 %v643, %v787
  %v789 = vpop.f32.mrf.mxu0
  %790 = vmatprep.mubr.f32.mxu0 0.0
  %791 = vmatmul.mubr.f32.gmra.mxu0 %v82
  %v792 = vpop.f32.mrf.mxu0
  %v793 = vadd.f32 %v648, %v792
  %v794 = vpop.f32.mrf.mxu0
  %795 = vmatprep.mubr.f32.mxu0 0.0
  %796 = vmatmul.mubr.f32.gmra.mxu0 %v89
  %v797 = vpop.f32.mrf.mxu0
  %v798 = vadd.f32 %v653, %v797
  %v799 = vpop.f32.mrf.mxu0
  %800 = vmatprep.mubr.f32.mxu0 0.0
  %801 = vmatmul.mubr.f32.gmra.mxu0 %v96
  %v802 = vpop.f32.mrf.mxu0
  %v803 = vadd.f32 %v658, %v802
  %v804 = vpop.f32.mrf.mxu0
  %805 = vmatprep.mubr.f32.mxu0 0.0
  %806 = vmatmul.mubr.f32.gmra.mxu0 %v103
  %v807 = vpop.f32.mrf.mxu0
  %v808 = vadd.f32 %v663, %v807
  %v809 = vpop.f32.mrf.mxu0
  %810 = vmatprep.mubr.f32.mxu0 0.0
  %811 = vmatmul.mubr.f32.gmra.mxu0 %v110
  %v812 = vpop.f32.mrf.mxu0
  %v813 = vadd.f32 %v668, %v812
  %v814 = vpop.f32.mrf.mxu0
  %815 = vmatprep.mubr.f32.mxu0 0.0
  %816 = vmatmul.mubr.f32.gmra.mxu0 %v117
  %v817 = vpop.f32.mrf.mxu0
  %v818 = vadd.f32 %v673, %v817
  %v819 = vpop.f32.mrf.mxu0
  %820 = vmatprep.mubr.f32.mxu0 0.0
  %821 = vmatmul.mubr.f32.gmra.mxu0 %v124
  %v822 = vpop.f32.mrf.mxu0
  %v823 = vadd.f32 %v678, %v822
  %v824 = vpop.f32.mrf.mxu0
  %825 = vmatprep.mubr.f32.mxu0 0.0
  %826 = vmatmul.mubr.f32.gmra.mxu0 %v131
  %v827 = vpop.f32.mrf.mxu0
  %v828 = vadd.f32 %v683, %v827
  %v829 = vpop.f32.mrf.mxu0
  %830 = vdwg.mxu0
  %v831 = vmax.f32 %v753, 0.0
  %v832 = vmax.f32 %v758, 0.0
  %v833 = vmax.f32 %v763, 0.0
  %v834 = vmax.f32 %v768, 0.0
  %v835 = vmax.f32 %v773, 0.0
  %v836 = vmax.f32 %v778, 0.0
  %v837 = vmax.f32 %v783, 0.0
  %v838 = vmax.f32 %v788, 0.0
  %v839 = vmax.f32 %v793, 0.0
  %v840 = vmax.f32 %v798, 0.0
  %v841 = vmax.f32 %v803, 0.0
  %v842 = vmax.f32 %v808, 0.0
  %v843 = vmax.f32 %v813, 0.0
  %v844 = vmax.f32 %v818, 0.0
  %v845 = vmax.f32 %v823, 0.0
  %v846 = vmax.f32 %v828, 0.0
  %v847 = vld [vmem:[%s3] sm:$0xff]
  %v848 = vld [vmem:[%s3 + $0x8] sm:$0xff]
  %v849 = vld [vmem:[%s3 + $0x10] sm:$0xff]
  %v850 = vld [vmem:[%s3 + $0x18] sm:$0xff]
  %v851 = vld [vmem:[%s3 + $0x20] sm:$0xff]
  %v852 = vld [vmem:[%s3 + $0x28] sm:$0xff]
  %v853 = vld [vmem:[%s3 + $0x30] sm:$0xff]
  %v854 = vld [vmem:[%s3 + $0x38] sm:$0xff]
  %v855 = vld [vmem:[%s3 + $0x40] sm:$0xff]
  %v856 = vld [vmem:[%s3 + $0x48] sm:$0xff]
  %v857 = vld [vmem:[%s3 + $0x50] sm:$0xff]
  %v858 = vld [vmem:[%s3 + $0x58] sm:$0xff]
  %v859 = vld [vmem:[%s3 + $0x60] sm:$0xff]
  %v860 = vld [vmem:[%s3 + $0x68] sm:$0xff]
  %v861 = vld [vmem:[%s3 + $0x70] sm:$0xff]
  %v862 = vld [vmem:[%s3 + $0x78] sm:$0xff]
  %v863 = vld [vmem:[%s4] sm:$0x1]
  %v865 = vlaneseq
  %v866 = vshrl.u32 %v865, 7
  %v867 = vsub.s32 0, %v866
  %v868 = vrot.slane %v863, %v867
  %870 = vmatprep.subr.mxu0 0.0
  %871 = vmatpush1.msra.mxu0 %v862
  %872 = vmatprep.subr.mxu0 0.0
  %873 = vmatpush1.msra.mxu0 %v861
  %874 = vmatprep.subr.mxu0 0.0
  %875 = vmatpush1.msra.mxu0 %v860
  %876 = vmatprep.subr.mxu0 0.0
  %877 = vmatpush1.msra.mxu0 %v859
  %878 = vmatprep.subr.mxu0 0.0
  %879 = vmatpush1.msra.mxu0 %v858
  %880 = vmatprep.subr.mxu0 0.0
  %881 = vmatpush1.msra.mxu0 %v857
  %882 = vmatprep.subr.mxu0 0.0
  %883 = vmatpush1.msra.mxu0 %v856
  %884 = vmatprep.subr.mxu0 0.0
  %885 = vmatpush1.msra.mxu0 %v855
  %886 = vmatprep.subr.mxu0 0.0
  %887 = vmatpush1.msra.mxu0 %v854
  %888 = vmatprep.subr.mxu0 0.0
  %889 = vmatpush1.msra.mxu0 %v853
  %890 = vmatprep.subr.mxu0 0.0
  %891 = vmatpush1.msra.mxu0 %v852
  %892 = vmatprep.subr.mxu0 0.0
  %893 = vmatpush1.msra.mxu0 %v851
  %894 = vmatprep.subr.mxu0 0.0
  %895 = vmatpush1.msra.mxu0 %v850
  %896 = vmatprep.subr.mxu0 0.0
  %897 = vmatpush1.msra.mxu0 %v849
  %898 = vmatprep.subr.mxu0 0.0
  %899 = vmatpush1.msra.mxu0 %v848
  %900 = vmatprep.subr.mxu0 0.0
  %901 = vmatpush1.msra.mxu0 %v847
  %902 = vmatprep.subr.mxu0 0.0
  %903 = vmatpush2.msra.mxu0 0.0
  %904 = vmatprep.subr.mxu0 0.0
  %905 = vmatpush2.msra.mxu0 0.0
  %906 = vmatprep.subr.mxu0 0.0
  %907 = vmatpush2.msra.mxu0 0.0
  %908 = vmatprep.subr.mxu0 0.0
  %909 = vmatpush2.msra.mxu0 0.0
  %910 = vmatprep.subr.mxu0 0.0
  %911 = vmatpush2.msra.mxu0 0.0
  %912 = vmatprep.subr.mxu0 0.0
  %913 = vmatpush2.msra.mxu0 0.0
  %914 = vmatprep.subr.mxu0 0.0
  %915 = vmatpush2.msra.mxu0 0.0
  %916 = vmatprep.subr.mxu0 0.0
  %917 = vmatpush2.msra.mxu0 0.0
  %918 = vmatprep.subr.mxu0 0.0
  %919 = vmatpush2.msra.mxu0 0.0
  %920 = vmatprep.subr.mxu0 0.0
  %921 = vmatpush2.msra.mxu0 0.0
  %922 = vmatprep.subr.mxu0 0.0
  %923 = vmatpush2.msra.mxu0 0.0
  %924 = vmatprep.subr.mxu0 0.0
  %925 = vmatpush2.msra.mxu0 0.0
  %926 = vmatprep.subr.mxu0 0.0
  %927 = vmatpush2.msra.mxu0 0.0
  %928 = vmatprep.subr.mxu0 0.0
  %929 = vmatpush2.msra.mxu0 0.0
  %930 = vmatprep.subr.mxu0 0.0
  %931 = vmatpush2.msra.mxu0 0.0
  %932 = vmatprep.subr.mxu0 0.0
  %933 = vmatpush2.msra.mxu0 0.0
  %934 = vmatprep.mubr.f32.mxu0 0.0
  %935 = vmatmul.mubr.f32.gmra.mxu0 %v831
  %v936 = vpop.f32.mrf.mxu0
  %v937 = vadd.f32 %v868, %v936
  %v938 = vpop.f32.mrf.mxu0
  %939 = vmatprep.mubr.f32.mxu0 0.0
  %940 = vmatmul.mubr.f32.gmra.mxu0 %v832
  %v941 = vpop.f32.mrf.mxu0
  %v942 = vadd.f32 %v868, %v941
  %v943 = vpop.f32.mrf.mxu0
  %944 = vmatprep.mubr.f32.mxu0 0.0
  %945 = vmatmul.mubr.f32.gmra.mxu0 %v833
  %v946 = vpop.f32.mrf.mxu0
  %v947 = vadd.f32 %v868, %v946
  %v948 = vpop.f32.mrf.mxu0
  %949 = vmatprep.mubr.f32.mxu0 0.0
  %950 = vmatmul.mubr.f32.gmra.mxu0 %v834
  %v951 = vpop.f32.mrf.mxu0
  %v952 = vadd.f32 %v868, %v951
  %v953 = vpop.f32.mrf.mxu0
  %954 = vmatprep.mubr.f32.mxu0 0.0
  %955 = vmatmul.mubr.f32.gmra.mxu0 %v835
  %v956 = vpop.f32.mrf.mxu0
  %v957 = vadd.f32 %v868, %v956
  %v958 = vpop.f32.mrf.mxu0
  %959 = vmatprep.mubr.f32.mxu0 0.0
  %960 = vmatmul.mubr.f32.gmra.mxu0 %v836
  %v961 = vpop.f32.mrf.mxu0
  %v962 = vadd.f32 %v868, %v961
  %v963 = vpop.f32.mrf.mxu0
  %964 = vmatprep.mubr.f32.mxu0 0.0
  %965 = vmatmul.mubr.f32.gmra.mxu0 %v837
  %v966 = vpop.f32.mrf.mxu0
  %v967 = vadd.f32 %v868, %v966
  %v968 = vpop.f32.mrf.mxu0
  %969 = vmatprep.mubr.f32.mxu0 0.0
  %970 = vmatmul.mubr.f32.gmra.mxu0 %v838
  %v971 = vpop.f32.mrf.mxu0
  %v972 = vadd.f32 %v868, %v971
  %v973 = vpop.f32.mrf.mxu0
  %974 = vmatprep.mubr.f32.mxu0 0.0
  %975 = vmatmul.mubr.f32.gmra.mxu0 %v839
  %v976 = vpop.f32.mrf.mxu0
  %v977 = vadd.f32 %v868, %v976
  %v978 = vpop.f32.mrf.mxu0
  %979 = vmatprep.mubr.f32.mxu0 0.0
  %980 = vmatmul.mubr.f32.gmra.mxu0 %v840
  %v981 = vpop.f32.mrf.mxu0
  %v982 = vadd.f32 %v868, %v981
  %v983 = vpop.f32.mrf.mxu0
  %984 = vmatprep.mubr.f32.mxu0 0.0
  %985 = vmatmul.mubr.f32.gmra.mxu0 %v841
  %v986 = vpop.f32.mrf.mxu0
  %v987 = vadd.f32 %v868, %v986
  %v988 = vpop.f32.mrf.mxu0
  %989 = vmatprep.mubr.f32.mxu0 0.0
  %990 = vmatmul.mubr.f32.gmra.mxu0 %v842
  %v991 = vpop.f32.mrf.mxu0
  %v992 = vadd.f32 %v868, %v991
  %v993 = vpop.f32.mrf.mxu0
  %994 = vmatprep.mubr.f32.mxu0 0.0
  %995 = vmatmul.mubr.f32.gmra.mxu0 %v843
  %v996 = vpop.f32.mrf.mxu0
  %v997 = vadd.f32 %v868, %v996
  %v998 = vpop.f32.mrf.mxu0
  %999 = vmatprep.mubr.f32.mxu0 0.0
  %1000 = vmatmul.mubr.f32.gmra.mxu0 %v844
  %v1001 = vpop.f32.mrf.mxu0
  %v1002 = vadd.f32 %v868, %v1001
  %v1003 = vpop.f32.mrf.mxu0
  %1004 = vmatprep.mubr.f32.mxu0 0.0
  %1005 = vmatmul.mubr.f32.gmra.mxu0 %v845
  %v1006 = vpop.f32.mrf.mxu0
  %v1007 = vadd.f32 %v868, %v1006
  %v1008 = vpop.f32.mrf.mxu0
  %1009 = vmatprep.mubr.f32.mxu0 0.0
  %1010 = vmatmul.mubr.f32.gmra.mxu0 %v846
  %v1011 = vpop.f32.mrf.mxu0
  %v1012 = vadd.f32 %v868, %v1011
  %v1013 = vpop.f32.mrf.mxu0
  %1014 = vdwg.mxu0
  %1015 = vst [vmem:[%s5] sm:$0xff] %v937
  %1016 = vst [vmem:[%s5 + $0x8] sm:$0xff] %v942
  %1017 = vst [vmem:[%s5 + $0x10] sm:$0xff] %v947
  %1018 = vst [vmem:[%s5 + $0x18] sm:$0xff] %v952
  %1019 = vst [vmem:[%s5 + $0x20] sm:$0xff] %v957
  %1020 = vst [vmem:[%s5 + $0x28] sm:$0xff] %v962
  %1021 = vst [vmem:[%s5 + $0x30] sm:$0xff] %v967
  %1022 = vst [vmem:[%s5 + $0x38] sm:$0xff] %v972
  %1023 = vst [vmem:[%s5 + $0x40] sm:$0xff] %v977
  %1024 = vst [vmem:[%s5 + $0x48] sm:$0xff] %v982
  %1025 = vst [vmem:[%s5 + $0x50] sm:$0xff] %v987
  %1026 = vst [vmem:[%s5 + $0x58] sm:$0xff] %v992
  %1027 = vst [vmem:[%s5 + $0x60] sm:$0xff] %v997
  %1028 = vst [vmem:[%s5 + $0x68] sm:$0xff] %v1002
  %1029 = vst [vmem:[%s5 + $0x70] sm:$0xff] %v1007
  %1030 = vst [vmem:[%s5 + $0x78] sm:$0xff] %v1012
  // Predicated region
  $region22: #{nn_forward.1} parent=0 // pred_check
    _
  $region23: #{nn_forward.1} parent=0 // pred_check_branch
    %1032 = sbr.rel (0) target = $region25
  $region24: #{nn_forward.1} parent=0 // pred_region
    _
  $region25: #{nn_forward.1} parent=0 // pred_fallthru
    _
  // Predicated region
  $region26: #{nn_forward.1} parent=0 // pred_check
    _
  $region27: #{nn_forward.1} parent=0 // pred_check_branch
    %1034 = sbr.rel (0) target = $region29
  $region28: #{nn_forward.1} parent=0 // pred_region
    _
  $region29: #{nn_forward.1} parent=0 // pred_fallthru
    _

</llo_original>
